<compile_context>
chip_gen: v6e
topology: v6e:2x2x1
jax: 0.10.0
libtpu: 0.0.40
codegen_flags: <defaults>
</compile_context>

<pallas_src>
import functools

import jax
import jax.numpy as jnp
from jax.experimental import pallas as pl
from jax.experimental.pallas import tpu as pltpu


def _round_up(x: int, m: int) -> int:
    return (x + m - 1) // m * m


def _ernie_ctm_emb_kernel(
    ids_sref,      # SMEM (N_pad,) int32  token ids          (scalar prefetch)
    pos_sref,      # SMEM (N_pad,) int32  position ids       (scalar prefetch)
    tt_ref,        # VMEM (TILE_N, 1) int32 token type ids
    word_hbm,      # HBM  (V, E) f32 word embedding table
    pos_hbm,       # HBM  (P, E) f32 position embedding table
    type_tab_ref,  # VMEM (T, E) f32 token-type table (resident every step)
    gamma_ref,     # VMEM (1, E) f32
    beta_ref,      # VMEM (1, E) f32
    out_ref,       # VMEM (TILE_N, E) f32
    word_buf,      # VMEM scratch (TILE_N, E) f32
    pos_buf,       # VMEM scratch (TILE_N, E) f32
    sem,           # DMA semaphores (2,)
    *,
    eps: float,
):
    tile_n, e = out_ref.shape
    t_vocab = type_tab_ref.shape[0]
    base = pl.program_id(0) * tile_n

    # ---- issue per-row gather DMAs for the word / position tables (in HBM).
    def _issue(r, carry):
        wid = ids_sref[base + r]
        pid = pos_sref[base + r]
        pltpu.make_async_copy(
            word_hbm.at[pl.ds(wid, 1), :], word_buf.at[pl.ds(r, 1), :], sem.at[0]
        ).start()
        pltpu.make_async_copy(
            pos_hbm.at[pl.ds(pid, 1), :], pos_buf.at[pl.ds(r, 1), :], sem.at[1]
        ).start()
        return carry

    jax.lax.fori_loop(0, tile_n, _issue, 0)

    # ---- token-type embedding via VPU select/mask-sum (tiny vocab, no MXU),
    #      computed while the gather DMAs are in flight.
    tt = tt_ref[...]                                   # (TILE_N, 1) int32
    type_emb = jnp.zeros((tile_n, e), jnp.float32)
    for t in range(t_vocab):                           # static, tiny loop
        row = type_tab_ref[pl.ds(t, 1), :]             # (1, E)
        mask = jnp.where(tt == t, 1.0, 0.0)            # (TILE_N, 1)
        type_emb = type_emb + mask * row

    # ---- wait for all row copies of this tile (same-size copies share a sem).
    def _drain(r, carry):
        pltpu.make_async_copy(
            word_hbm.at[pl.ds(0, 1), :], word_buf.at[pl.ds(r, 1), :], sem.at[0]
        ).wait()
        pltpu.make_async_copy(
            pos_hbm.at[pl.ds(0, 1), :], pos_buf.at[pl.ds(r, 1), :], sem.at[1]
        ).wait()
        return carry

    jax.lax.fori_loop(0, tile_n, _drain, 0)

    x = word_buf[...] + pos_buf[...] + type_emb        # (TILE_N, E) f32

    # ---- LayerNorm over the embedding dim (gamma folded into the inv factor).
    mean = jnp.mean(x, axis=-1, keepdims=True)
    xc = x - mean
    var = jnp.mean(xc * xc, axis=-1, keepdims=True)
    inv = jax.lax.rsqrt(var + eps)
    out_ref[...] = xc * (inv * gamma_ref[...]) + beta_ref[...]


def ernie_ctm_embeddings(
    input_ids,          # (B, S) int32
    token_type_ids,     # (B, S) int32
    position_ids,       # (B, S) int32
    word_table,         # (V, E) f32
    pos_table,          # (P, E) f32
    type_table,         # (T, E) f32
    gamma,              # (E,)   f32
    beta,               # (E,)   f32
    *,
    eps: float = 1e-12,
    tile_n: int = 256,
):
    b, s = input_ids.shape
    e = word_table.shape[1]
    n = b * s

    assert tile_n % 8 == 0, "tile_n must be a multiple of 8 (sublane granularity)"
    tile_n = min(tile_n, _round_up(n, 8))
    n_pad = _round_up(n, tile_n)
    pad = n_pad - n

    # Flatten + pad ids (pad rows gather row 0, results are sliced off).
    ids_flat = jnp.pad(input_ids.reshape(n).astype(jnp.int32), (0, pad))
    pos_flat = jnp.pad(position_ids.reshape(n).astype(jnp.int32), (0, pad))
    tt_flat = jnp.pad(token_type_ids.reshape(n).astype(jnp.int32),
                      (0, pad)).reshape(n_pad, 1)

    word_tab = word_table.astype(jnp.float32)
    pos_tab = pos_table.astype(jnp.float32)
    type_tab = type_table.astype(jnp.float32)
    gamma2 = gamma.reshape(1, e).astype(jnp.float32)
    beta2 = beta.reshape(1, e).astype(jnp.float32)

    kernel = functools.partial(_ernie_ctm_emb_kernel, eps=eps)

    grid_spec = pltpu.PrefetchScalarGridSpec(
        num_scalar_prefetch=2,                 # ids, position ids -> SMEM
        grid=(n_pad // tile_n,),
        in_specs=[
            pl.BlockSpec((tile_n, 1), lambda i, ids, pos: (i, 0)),     # token types
            pl.BlockSpec(memory_space=pl.ANY),                          # word table (HBM)
            pl.BlockSpec(memory_space=pl.ANY),                          # pos table (HBM)
            pl.BlockSpec(type_tab.shape, lambda i, ids, pos: (0, 0)),   # type table
            pl.BlockSpec((1, e), lambda i, ids, pos: (0, 0)),           # gamma
            pl.BlockSpec((1, e), lambda i, ids, pos: (0, 0)),           # beta
        ],
        out_specs=pl.BlockSpec((tile_n, e), lambda i, ids, pos: (i, 0)),
        scratch_shapes=[
            pltpu.VMEM((tile_n, e), jnp.float32),   # gathered word rows
            pltpu.VMEM((tile_n, e), jnp.float32),   # gathered position rows
            pltpu.SemaphoreType.DMA((2,)),
        ],
    )

    out = pl.pallas_call(
        kernel,
        out_shape=jax.ShapeDtypeStruct((n_pad, e), jnp.float32),
        grid_spec=grid_spec,
        compiler_params=pltpu.CompilerParams(
            dimension_semantics=("parallel",),      # megacore split on v7x
            vmem_limit_bytes=32 * 1024 * 1024,      # explicit; safe on v5e/v6e/v7x
        ),
    )(ids_flat, pos_flat, tt_flat, word_tab, pos_tab, type_tab, gamma2, beta2)

    return out[:n].reshape(b, s, e)


def _reference(input_ids, token_type_ids, position_ids, word_table, pos_table,
               type_table, gamma, beta, eps=1e-12):
    x = (word_table[input_ids]
         + pos_table[position_ids]
         + type_table[token_type_ids])
    mean = jnp.mean(x, axis=-1, keepdims=True)
    var = jnp.mean((x - mean) ** 2, axis=-1, keepdims=True)
    return (x - mean) / jnp.sqrt(var + eps) * gamma + beta


if __name__ == "__main__":
    # Small config consistent with the module.
    vocab_size = 64
    embedding_size = 32
    max_position_embeddings = 40
    type_vocab_size = 2
    cls_num = 2
    pad_token_id = 0
    layer_norm_eps = 1e-12
    batch, seq = 2, 8

    key = jax.random.PRNGKey(0)
    k_word, k_pos, k_type, k_ids, k_tt = jax.random.split(key, 5)

    # Deterministic parameter init (synthetic, mirrors nn.Embedding/LayerNorm shapes).
    word_table = 0.02 * jax.random.normal(k_word, (vocab_size, embedding_size), jnp.float32)
    # nn.Embedding(padding_idx=pad_token_id) initializes that row to zeros.
    word_table = word_table.at[pad_token_id].set(0.0)
    pos_table = 0.02 * jax.random.normal(k_pos, (max_position_embeddings, embedding_size), jnp.float32)
    type_table = 0.02 * jax.random.normal(k_type, (type_vocab_size, embedding_size), jnp.float32)
    gamma = jnp.ones((embedding_size,), jnp.float32)
    beta = jnp.zeros((embedding_size,), jnp.float32)

    # Inputs.
    input_ids = jax.random.randint(k_ids, (batch, seq), 0, vocab_size, dtype=jnp.int32)

    # Buffered position_ids: [0]*cls_num ++ arange(1, max_position_embeddings), sliced to seq.
    pos_buffer = jnp.concatenate(
        [jnp.zeros((cls_num,), jnp.int32),
         jnp.arange(1, max_position_embeddings, dtype=jnp.int32)])
    position_ids = jnp.broadcast_to(pos_buffer[:seq][None, :], (batch, seq))

    # Buffered token_type_ids: zeros, expanded to (batch, seq).
    token_type_ids = jnp.zeros((batch, seq), jnp.int32)

    out = ernie_ctm_embeddings(
        input_ids, token_type_ids, position_ids,
        word_table, pos_table, type_table, gamma, beta,
        eps=layer_norm_eps, tile_n=8)        # tile_n=8 -> grid of 2 tiles at this toy size
    out = jax.block_until_ready(out)

    ref = _reference(input_ids, token_type_ids, position_ids,
                     word_table, pos_table, type_table, gamma, beta,
                     eps=layer_norm_eps)
    assert out.shape == (batch, seq, embedding_size)
    assert jnp.allclose(out, ref, atol=1e-5, rtol=1e-5), "mismatch vs reference"

    print("KERNEL_OK")
</pallas_src>

<mosaic_0001>
module attributes {stable_mosaic.version = 11 : i64} {
  func.func @_ernie_ctm_emb_kernel(%arg0: i32, %arg1: memref<16xi32, #tpu.memory_space<smem>>, %arg2: memref<16xi32, #tpu.memory_space<smem>>, %arg3: memref<8x1xi32, #tpu.memory_space<vmem>>, %arg4: memref<64x32xf32, #tpu.memory_space<any>>, %arg5: memref<40x32xf32, #tpu.memory_space<any>>, %arg6: memref<2x32xf32, #tpu.memory_space<vmem>>, %arg7: memref<1x32xf32, #tpu.memory_space<vmem>>, %arg8: memref<1x32xf32, #tpu.memory_space<vmem>>, %arg9: memref<8x32xf32, #tpu.memory_space<vmem>>, %arg10: memref<8x32xf32, #tpu.memory_space<vmem>>, %arg11: memref<8x32xf32, #tpu.memory_space<vmem>>, %arg12: memref<2x!tpu.dma_semaphore, #tpu.memory_space<semaphore_mem>>) attributes {dimension_semantics = [#tpu.dimension_semantics<parallel>], iteration_bounds = array<i64: 2>, scalar_prefetch = 2 : i64, scratch_operands = 3 : i64, tpu.core_type = #tpu.core_type<tc>, window_params = [{transform_indices = @transform_0, window_bounds = array<i64: 8, 1>}, {}, {}, {pipeline_mode = #tpu.pipeline_mode<synchronous>, transform_indices = @transform_3, window_bounds = array<i64: 2, 32>}, {pipeline_mode = #tpu.pipeline_mode<synchronous>, transform_indices = @transform_4, window_bounds = array<i64: 1, 32>}, {pipeline_mode = #tpu.pipeline_mode<synchronous>, transform_indices = @transform_5, window_bounds = array<i64: 1, 32>}, {transform_indices = @transform_6, window_bounds = array<i64: 8, 32>}]} {
    %c8_i32 = arith.constant 8 : i32
    %0 = arith.muli %arg0, %c8_i32 : i32
    %c0_i32 = arith.constant 0 : i32
    %c8_i32_0 = arith.constant 8 : i32
    %1 = arith.addi %c0_i32, %c8_i32_0 : i32
    %c1_i32 = arith.constant 1 : i32
    scf.for %arg13 = %c0_i32 to %1 step %c1_i32  : i32 {
      %52 = arith.addi %0, %arg13 : i32
      %53 = arith.index_cast %52 : i32 to index
      %54 = memref.load %arg1[%53] : memref<16xi32, #tpu.memory_space<smem>>
      %55 = arith.addi %0, %arg13 : i32
      %56 = arith.index_cast %55 : i32 to index
      %57 = memref.load %arg2[%56] : memref<16xi32, #tpu.memory_space<smem>>
      %c0_i32_31 = arith.constant 0 : i32
      %c0_i32_32 = arith.constant 0 : i32
      %58 = tpu.memref_slice %arg4[%54, %c0_i32_32] : memref<64x32xf32, #tpu.memory_space<any>> -> memref<1x32xf32, #tpu.memory_space<any>>
      %c0_i32_33 = arith.constant 0 : i32
      %59 = tpu.memref_slice %arg10[%arg13, %c0_i32_33] : memref<8x32xf32, #tpu.memory_space<vmem>> -> memref<1x32xf32, #tpu.memory_space<vmem>>
      %60 = tpu.memref_slice %arg12[%c0_i32_31] : memref<2x!tpu.dma_semaphore, #tpu.memory_space<semaphore_mem>> -> memref<1x!tpu.dma_semaphore, #tpu.memory_space<semaphore_mem>>
      %61 = tpu.memref_squeeze %60 : memref<1x!tpu.dma_semaphore, #tpu.memory_space<semaphore_mem>> -> memref<!tpu.dma_semaphore, #tpu.memory_space<semaphore_mem>>
      tpu.enqueue_dma source(%58 : memref<1x32xf32, #tpu.memory_space<any>>) target(%59 : memref<1x32xf32, #tpu.memory_space<vmem>>) target_semaphore(%61 : memref<!tpu.dma_semaphore, #tpu.memory_space<semaphore_mem>>)
      %c1_i32_34 = arith.constant 1 : i32
      %c0_i32_35 = arith.constant 0 : i32
      %62 = tpu.memref_slice %arg5[%57, %c0_i32_35] : memref<40x32xf32, #tpu.memory_space<any>> -> memref<1x32xf32, #tpu.memory_space<any>>
      %c0_i32_36 = arith.constant 0 : i32
      %63 = tpu.memref_slice %arg11[%arg13, %c0_i32_36] : memref<8x32xf32, #tpu.memory_space<vmem>> -> memref<1x32xf32, #tpu.memory_space<vmem>>
      %64 = tpu.memref_slice %arg12[%c1_i32_34] : memref<2x!tpu.dma_semaphore, #tpu.memory_space<semaphore_mem>> -> memref<1x!tpu.dma_semaphore, #tpu.memory_space<semaphore_mem>>
      %65 = tpu.memref_squeeze %64 : memref<1x!tpu.dma_semaphore, #tpu.memory_space<semaphore_mem>> -> memref<!tpu.dma_semaphore, #tpu.memory_space<semaphore_mem>>
      tpu.enqueue_dma source(%62 : memref<1x32xf32, #tpu.memory_space<any>>) target(%63 : memref<1x32xf32, #tpu.memory_space<vmem>>) target_semaphore(%65 : memref<!tpu.dma_semaphore, #tpu.memory_space<semaphore_mem>>)
    }
    %c8_i32_1 = arith.constant 8 : i32
    %c0 = arith.constant 0 : index
    %c0_2 = arith.constant 0 : index
    %2 = vector.load %arg3[%c0, %c0_2] : memref<8x1xi32, #tpu.memory_space<vmem>>, vector<8x1xi32>
    %cst = arith.constant 0.000000e+00 : f32
    %3 = vector.broadcast %cst : f32 to vector<8x32xf32>
    %c0_3 = arith.constant 0 : index
    %c0_4 = arith.constant 0 : index
    %4 = vector.load %arg6[%c0_3, %c0_4] : memref<2x32xf32, #tpu.memory_space<vmem>>, vector<1x32xf32>
    %c0_i32_5 = arith.constant 0 : i32
    %5 = vector.broadcast %c0_i32_5 : i32 to vector<8x1xi32>
    %6 = arith.cmpi eq, %2, %5 : vector<8x1xi32>
    %cst_6 = arith.constant 1.000000e+00 : f32
    %cst_7 = arith.constant 0.000000e+00 : f32
    %7 = vector.broadcast %cst_6 : f32 to vector<8x1xf32>
    %8 = vector.broadcast %cst_7 : f32 to vector<8x1xf32>
    %9 = arith.select %6, %7, %8 : vector<8x1xi1>, vector<8x1xf32>
    %10 = vector.broadcast %9 : vector<8x1xf32> to vector<8x32xf32>
    %11 = vector.broadcast %4 : vector<1x32xf32> to vector<8x32xf32>
    %12 = arith.mulf %10, %11 : vector<8x32xf32>
    %13 = arith.addf %3, %12 : vector<8x32xf32>
    %c1 = arith.constant 1 : index
    %c0_8 = arith.constant 0 : index
    %14 = vector.load %arg6[%c1, %c0_8] : memref<2x32xf32, #tpu.memory_space<vmem>>, vector<1x32xf32>
    %c1_i32_9 = arith.constant 1 : i32
    %15 = vector.broadcast %c1_i32_9 : i32 to vector<8x1xi32>
    %16 = arith.cmpi eq, %2, %15 : vector<8x1xi32>
    %cst_10 = arith.constant 1.000000e+00 : f32
    %cst_11 = arith.constant 0.000000e+00 : f32
    %17 = vector.broadcast %cst_10 : f32 to vector<8x1xf32>
    %18 = vector.broadcast %cst_11 : f32 to vector<8x1xf32>
    %19 = arith.select %16, %17, %18 : vector<8x1xi1>, vector<8x1xf32>
    %20 = vector.broadcast %19 : vector<8x1xf32> to vector<8x32xf32>
    %21 = vector.broadcast %14 : vector<1x32xf32> to vector<8x32xf32>
    %22 = arith.mulf %20, %21 : vector<8x32xf32>
    %23 = arith.addf %13, %22 : vector<8x32xf32>
    %c0_i32_12 = arith.constant 0 : i32
    %c8_i32_13 = arith.constant 8 : i32
    %24 = arith.addi %c0_i32_12, %c8_i32_13 : i32
    %c1_i32_14 = arith.constant 1 : i32
    scf.for %arg13 = %c0_i32_12 to %24 step %c1_i32_14  : i32 {
      %c0_i32_31 = arith.constant 0 : i32
      %c0_i32_32 = arith.constant 0 : i32
      %c0_i32_33 = arith.constant 0 : i32
      %52 = tpu.memref_slice %arg4[%c0_i32_32, %c0_i32_33] : memref<64x32xf32, #tpu.memory_space<any>> -> memref<1x32xf32, #tpu.memory_space<any>>
      %c0_i32_34 = arith.constant 0 : i32
      %53 = tpu.memref_slice %arg10[%arg13, %c0_i32_34] : memref<8x32xf32, #tpu.memory_space<vmem>> -> memref<1x32xf32, #tpu.memory_space<vmem>>
      %54 = tpu.memref_slice %arg12[%c0_i32_31] : memref<2x!tpu.dma_semaphore, #tpu.memory_space<semaphore_mem>> -> memref<1x!tpu.dma_semaphore, #tpu.memory_space<semaphore_mem>>
      %55 = tpu.memref_squeeze %54 : memref<1x!tpu.dma_semaphore, #tpu.memory_space<semaphore_mem>> -> memref<!tpu.dma_semaphore, #tpu.memory_space<semaphore_mem>>
      tpu.wait_dma2 semaphore(%55 : memref<!tpu.dma_semaphore, #tpu.memory_space<semaphore_mem>>) src(%52 : memref<1x32xf32, #tpu.memory_space<any>>) dst(%53 : memref<1x32xf32, #tpu.memory_space<vmem>>)
      %c1_i32_35 = arith.constant 1 : i32
      %c0_i32_36 = arith.constant 0 : i32
      %c0_i32_37 = arith.constant 0 : i32
      %56 = tpu.memref_slice %arg5[%c0_i32_36, %c0_i32_37] : memref<40x32xf32, #tpu.memory_space<any>> -> memref<1x32xf32, #tpu.memory_space<any>>
      %c0_i32_38 = arith.constant 0 : i32
      %57 = tpu.memref_slice %arg11[%arg13, %c0_i32_38] : memref<8x32xf32, #tpu.memory_space<vmem>> -> memref<1x32xf32, #tpu.memory_space<vmem>>
      %58 = tpu.memref_slice %arg12[%c1_i32_35] : memref<2x!tpu.dma_semaphore, #tpu.memory_space<semaphore_mem>> -> memref<1x!tpu.dma_semaphore, #tpu.memory_space<semaphore_mem>>
      %59 = tpu.memref_squeeze %58 : memref<1x!tpu.dma_semaphore, #tpu.memory_space<semaphore_mem>> -> memref<!tpu.dma_semaphore, #tpu.memory_space<semaphore_mem>>
      tpu.wait_dma2 semaphore(%59 : memref<!tpu.dma_semaphore, #tpu.memory_space<semaphore_mem>>) src(%56 : memref<1x32xf32, #tpu.memory_space<any>>) dst(%57 : memref<1x32xf32, #tpu.memory_space<vmem>>)
    }
    %c8_i32_15 = arith.constant 8 : i32
    %c0_16 = arith.constant 0 : index
    %c0_17 = arith.constant 0 : index
    %25 = vector.load %arg10[%c0_16, %c0_17] : memref<8x32xf32, #tpu.memory_space<vmem>>, vector<8x32xf32>
    %c0_18 = arith.constant 0 : index
    %c0_19 = arith.constant 0 : index
    %26 = vector.load %arg11[%c0_18, %c0_19] : memref<8x32xf32, #tpu.memory_space<vmem>>, vector<8x32xf32>
    %27 = arith.addf %25, %26 : vector<8x32xf32>
    %28 = arith.addf %27, %23 : vector<8x32xf32>
    %cst_20 = arith.constant dense<0.000000e+00> : vector<8xf32>
    %29 = vector.multi_reduction <add>, %28, %cst_20 [1] : vector<8x32xf32> to vector<8xf32>
    %30 = vector.shape_cast %29 : vector<8xf32> to vector<8x1xf32>
    %cst_21 = arith.constant 3.200000e+01 : f32
    %31 = vector.broadcast %cst_21 : f32 to vector<8x1xf32>
    %32 = arith.divf %30, %31 : vector<8x1xf32>
    %33 = vector.broadcast %32 : vector<8x1xf32> to vector<8x32xf32>
    %34 = arith.subf %28, %33 : vector<8x32xf32>
    %35 = arith.mulf %34, %34 : vector<8x32xf32>
    %cst_22 = arith.constant dense<0.000000e+00> : vector<8xf32>
    %36 = vector.multi_reduction <add>, %35, %cst_22 [1] : vector<8x32xf32> to vector<8xf32>
    %37 = vector.shape_cast %36 : vector<8xf32> to vector<8x1xf32>
    %cst_23 = arith.constant 3.200000e+01 : f32
    %38 = vector.broadcast %cst_23 : f32 to vector<8x1xf32>
    %39 = arith.divf %37, %38 : vector<8x1xf32>
    %cst_24 = arith.constant 9.99999996E-13 : f32
    %40 = vector.broadcast %cst_24 : f32 to vector<8x1xf32>
    %41 = arith.addf %39, %40 : vector<8x1xf32>
    %42 = math.rsqrt %41 : vector<8x1xf32>
    %c0_25 = arith.constant 0 : index
    %c0_26 = arith.constant 0 : index
    %43 = vector.load %arg7[%c0_25, %c0_26] : memref<1x32xf32, #tpu.memory_space<vmem>>, vector<1x32xf32>
    %44 = vector.broadcast %42 : vector<8x1xf32> to vector<8x32xf32>
    %45 = vector.broadcast %43 : vector<1x32xf32> to vector<8x32xf32>
    %46 = arith.mulf %44, %45 : vector<8x32xf32>
    %47 = arith.mulf %34, %46 : vector<8x32xf32>
    %c0_27 = arith.constant 0 : index
    %c0_28 = arith.constant 0 : index
    %48 = vector.load %arg8[%c0_27, %c0_28] : memref<1x32xf32, #tpu.memory_space<vmem>>, vector<1x32xf32>
    %49 = vector.broadcast %48 : vector<1x32xf32> to vector<8x32xf32>
    %50 = arith.addf %47, %49 : vector<8x32xf32>
    %c0_29 = arith.constant 0 : index
    %c0_30 = arith.constant 0 : index
    %51 = vector.load %arg9[%c0_29, %c0_30] : memref<8x32xf32, #tpu.memory_space<vmem>>, vector<8x32xf32>
    tpu.vector_store %arg9[%c0_29, %c0_30], %50 {strides = array<i32>} : memref<8x32xf32, #tpu.memory_space<vmem>>, vector<8x32xf32>,
    return
  }
  func.func @transform_0(%arg0: i32, %arg1: memref<16xi32, #tpu.memory_space<smem>>, %arg2: memref<16xi32, #tpu.memory_space<smem>>) -> (i32, i32) {
    %c0_i32 = arith.constant 0 : i32
    %c0_i32_0 = arith.constant 0 : i32
    return %arg0, %c0_i32 : i32, i32
  }
  func.func @transform_3(%arg0: i32, %arg1: memref<16xi32, #tpu.memory_space<smem>>, %arg2: memref<16xi32, #tpu.memory_space<smem>>) -> (i32, i32) {
    %c0_i32 = arith.constant 0 : i32
    %c0_i32_0 = arith.constant 0 : i32
    %c0_i32_1 = arith.constant 0 : i32
    return %c0_i32, %c0_i32_0 : i32, i32
  }
  func.func @transform_4(%arg0: i32, %arg1: memref<16xi32, #tpu.memory_space<smem>>, %arg2: memref<16xi32, #tpu.memory_space<smem>>) -> (i32, i32) {
    %c0_i32 = arith.constant 0 : i32
    %c0_i32_0 = arith.constant 0 : i32
    %c0_i32_1 = arith.constant 0 : i32
    return %c0_i32, %c0_i32_0 : i32, i32
  }
  func.func @transform_5(%arg0: i32, %arg1: memref<16xi32, #tpu.memory_space<smem>>, %arg2: memref<16xi32, #tpu.memory_space<smem>>) -> (i32, i32) {
    %c0_i32 = arith.constant 0 : i32
    %c0_i32_0 = arith.constant 0 : i32
    %c0_i32_1 = arith.constant 0 : i32
    return %c0_i32, %c0_i32_0 : i32, i32
  }
  func.func @transform_6(%arg0: i32, %arg1: memref<16xi32, #tpu.memory_space<smem>>, %arg2: memref<16xi32, #tpu.memory_space<smem>>) -> (i32, i32) {
    %c0_i32 = arith.constant 0 : i32
    %c0_i32_0 = arith.constant 0 : i32
    return %arg0, %c0_i32 : i32, i32
  }
}

</mosaic_0001>

<llo_original>
// kernel: tpu_custom_call.1
$region0: #{tpu_custom_call.1}
  #allocation0 [shape = 'u32[]', space=smem, size = 0x4, offset = 0x4, fixed_abs, tag = 'smem constant byte address 0x4 - core index']
  #allocation1 [shape = 'u32[144,128]{1,0:T(1,128)}', space=vmem, size = 0x12000, scoped, tag = 'internal scratch']
  #allocation2 [shape = 'f32[8,32]{1,0:T(8,128)}', space=vmem, size = 0x1000, scoped, tag = 'scratch operand']
  #allocation3 [shape = 'f32[8,32]{1,0:T(8,128)}', space=vmem, size = 0x1000, scoped, tag = 'scratch operand']
  #allocation4 [shape = 's32[2]{0}', space=sflag, size = 0x8, scoped, tag = 'scratch operand']
  #allocation5 [shape = 's32[1]{0}', space=sflag, size = 0x4, scoped, tag = 'scoped memory for tpu_custom_call.1']
  #allocation6 [shape = 'u8[512]{0}', space=smem, size = 0x200, scoped, tag = 'prefetched SMEM operand 0']
  #allocation7 [shape = 'u8[512]{0}', space=smem, size = 0x200, scoped, tag = 'prefetched SMEM operand 1']
  #allocation10 [shape = 's32[]', space=sflag, size = 0x4, offset = 0, fixed_abs, tag = 'sflag constant byte address 0x0 - dummy sync flag']
  #allocation11 [shape = 's32[]', space=sflag, size = 0x4, offset = 0, fixed_abs, tag = 'sflag constant byte address 0x0 - dummy sync flag']
  %s0 = inlined_call_operand.vmem [shape: s32[16], index: 0, kind: input, shape index: {}]
  %s1 = inlined_call_operand.vmem [shape: s32[16], index: 1, kind: input, shape index: {}]
  %s2 = inlined_call_operand.vmem [shape: s32[16,1], index: 2, kind: input, shape index: {}]
  %s3 = inlined_call_operand.vmem [shape: f32[64,32], index: 3, kind: input, shape index: {}]
  %s4 = inlined_call_operand.vmem [shape: f32[40,32], index: 4, kind: input, shape index: {}]
  %s5 = inlined_call_operand.vmem [shape: f32[2,32], index: 5, kind: input, shape index: {}]
  %s6 = inlined_call_operand.vmem [shape: f32[1,32], index: 6, kind: input, shape index: {}]
  %s7 = inlined_call_operand.vmem [shape: f32[1,32], index: 7, kind: input, shape index: {}]
  %s8 = inlined_call_operand.hbm [shape: f32[16,32], index: 8, kind: output, shape index: {}]
  %s9 = sld [smem:[#allocation0]]
  $region123: #{tpu_custom_call.1} parent=0
    _
  %s11 = ssub.s32 1, %s9
  %s12 = scalar_select 0, %s11, %s9
  %s13 = sshll.u32 %s0, 4
  %s14 = int_to_ptr.vmem [resolvable:$true] %s13
  %16 = dma.vmem_to_smem %s14, 16, [#allocation6], [#allocation5]
  %s17 = sshll.u32 %s1, 4
  %s18 = int_to_ptr.vmem [resolvable:$true] %s17
  %20 = dma.vmem_to_smem %s18, 16, [#allocation7], [#allocation5]
  %21 = dma.done [#allocation5], 32
  %22 = sfence
  $region1: #{tpu_custom_call.1} parent=0
    #allocation8 [shape = 'u8[8192]{0}', space=vmem, size = 0x2000, scoped, tag = 'output window, operand 0']
    #allocation9 [shape = 's32[2]{0}', space=sflag, size = 0x8, scoped, tag = 'scoped memory for tpu_custom_call.1']
    %23 = vsyncpa [#allocation9], 0
    %s24 = scalar_lea.sflag [#allocation9], 1
    %25 = vsyncpa %s24, 0
    loop: start=0, step=1, limit=4
    $region2: #{tpu_custom_call.1} parent=1 // loop_pre_header
      _
    $region3: #{tpu_custom_call.1} parent=1 // loop_header
      %s27 = sphi 0, %s31
      %p28 = scmp.ge.s32.totalorder %s27, 4
      %s37 = sphi 0, %s39
      %s40 = sphi 0, %s37
      %s41 = sphi 0, %s40
      %s57 = sphi 0, %s41
      %s61 = sphi 0, %s61
      %s63 = sphi 0, %s61
      %s64 = sphi 0, %s63
      %s78 = sphi 0, %s64
      %s82 = sphi 0, %s82
      %s84 = sphi 0, %s82
      %s85 = sphi 0, %s84
      %s99 = sphi 0, %s85
      %s103 = sphi 0, %s103
      %s105 = sphi 0, %s103
      %s106 = sphi 0, %s105
      %s120 = sphi 0, %s106
      %s126 = sphi 0, %s128
      %s129 = sphi 0, %s126
      %s130 = sphi 0, %s129
      %s146 = sphi 0, %s130
    $region4: #{tpu_custom_call.1} parent=1 // loop_header_branch
      %30 = sbr.rel (%p28) target = $region8
    $region5: #{tpu_custom_call.1} parent=1 // loop_body
      %s32 = ssub.s32 %s27, 1
      %s33 = ssub.s32 %s27, 2
      %s34 = sadd.s32 %s27, 1
      %s35 = ssub.s32 %s27, %s34
      %p36 = scmp.eq.s32.totalorder %s35, 0
      %s38 = sadd.s32 %s37, 1
      %s39 = scalar_select %p36, %s37, %s38
      %p42 = pneg %p36
      %p43 = scmp.eq.s32.totalorder %s27, 1
      %p44 = por %p42, %p43
      %p45 = scmp.ne.s32.totalorder %s37, %s40
      %p46 = scmp.eq.s32.totalorder %s27, 0
      %p47 = por %p45, %p46
      %p48 = scmp.ne.s32.totalorder %s37, %s40
      %p49 = scmp.eq.s32.totalorder %s32, 1
      %p50 = por %p48, %p49
      %p51 = scmp.ne.s32.totalorder %s40, %s41
      %p52 = scmp.eq.s32.totalorder %s32, 0
      %p53 = por %p51, %p52
      %p54 = scmp.ne.s32.totalorder %s40, %s41
      %p55 = scmp.eq.s32.totalorder %s33, 1
      %p56 = por %p54, %p55
      %p58 = scmp.ne.s32.totalorder %s41, %s57
      %p59 = scmp.eq.s32.totalorder %s33, 0
      %p60 = por %p58, %p59
      %s62 = sadd.s32 %s61, 1
      %p65 = scmp.eq.s32.totalorder %s27, 1
      %p66 = scmp.ne.s32.totalorder %s61, %s63
      %p67 = scmp.eq.s32.totalorder %s27, 0
      %p68 = por %p66, %p67
      %p69 = scmp.ne.s32.totalorder %s61, %s63
      %p70 = scmp.eq.s32.totalorder %s32, 1
      %p71 = por %p69, %p70
      %p72 = scmp.ne.s32.totalorder %s63, %s64
      %p73 = scmp.eq.s32.totalorder %s32, 0
      %p74 = por %p72, %p73
      %p75 = scmp.ne.s32.totalorder %s63, %s64
      %p76 = scmp.eq.s32.totalorder %s33, 1
      %p77 = por %p75, %p76
      %p79 = scmp.ne.s32.totalorder %s64, %s78
      %p80 = scmp.eq.s32.totalorder %s33, 0
      %p81 = por %p79, %p80
      %s83 = sadd.s32 %s82, 1
      %p86 = scmp.eq.s32.totalorder %s27, 1
      %p87 = scmp.ne.s32.totalorder %s82, %s84
      %p88 = scmp.eq.s32.totalorder %s27, 0
      %p89 = por %p87, %p88
      %p90 = scmp.ne.s32.totalorder %s82, %s84
      %p91 = scmp.eq.s32.totalorder %s32, 1
      %p92 = por %p90, %p91
      %p93 = scmp.ne.s32.totalorder %s84, %s85
      %p94 = scmp.eq.s32.totalorder %s32, 0
      %p95 = por %p93, %p94
      %p96 = scmp.ne.s32.totalorder %s84, %s85
      %p97 = scmp.eq.s32.totalorder %s33, 1
      %p98 = por %p96, %p97
      %p100 = scmp.ne.s32.totalorder %s85, %s99
      %p101 = scmp.eq.s32.totalorder %s33, 0
      %p102 = por %p100, %p101
      %s104 = sadd.s32 %s103, 1
      %p107 = scmp.eq.s32.totalorder %s27, 1
      %p108 = scmp.ne.s32.totalorder %s103, %s105
      %p109 = scmp.eq.s32.totalorder %s27, 0
      %p110 = por %p108, %p109
      %p111 = scmp.ne.s32.totalorder %s103, %s105
      %p112 = scmp.eq.s32.totalorder %s32, 1
      %p113 = por %p111, %p112
      %p114 = scmp.ne.s32.totalorder %s105, %s106
      %p115 = scmp.eq.s32.totalorder %s32, 0
      %p116 = por %p114, %p115
      %p117 = scmp.ne.s32.totalorder %s105, %s106
      %p118 = scmp.eq.s32.totalorder %s33, 1
      %p119 = por %p117, %p118
      %p121 = scmp.ne.s32.totalorder %s106, %s120
      %p122 = scmp.eq.s32.totalorder %s33, 0
      %p123 = por %p121, %p122
      %s124 = ssub.s32 %s27, %s34
      %p125 = scmp.eq.s32.totalorder %s124, 0
      %s127 = sadd.s32 %s126, 1
      %s128 = scalar_select %p125, %s126, %s127
      %p131 = pneg %p125
      %p132 = scmp.eq.s32.totalorder %s27, 1
      %p133 = por %p131, %p132
      %p134 = scmp.ne.s32.totalorder %s126, %s129
      %p135 = scmp.eq.s32.totalorder %s27, 0
      %p136 = por %p134, %p135
      %p137 = scmp.ne.s32.totalorder %s126, %s129
      %p138 = scmp.eq.s32.totalorder %s32, 1
      %p139 = por %p137, %p138
      %p140 = scmp.ne.s32.totalorder %s129, %s130
      %p141 = scmp.eq.s32.totalorder %s32, 0
      %p142 = por %p140, %p141
      %p143 = scmp.ne.s32.totalorder %s129, %s130
      %p144 = scmp.eq.s32.totalorder %s33, 1
      %p145 = por %p143, %p144
      %p147 = scmp.ne.s32.totalorder %s130, %s146
      %p148 = scmp.eq.s32.totalorder %s33, 0
      %p149 = por %p147, %p148
      %p150 = scmp.le.s32.totalorder 1, %s27
      %p151 = scmp.lt.s32.totalorder %s27, 3
      %p152 = pnand %p150, %p151
      %p153 = pneg %p152
      // Predicated region
      $region9: #{tpu_custom_call.1} parent=5 // pred_check
        _
      $region10: #{tpu_custom_call.1} parent=5 // pred_check_branch
        %155 = sbr.rel (%p152) target = $region12
      $region11: #{tpu_custom_call.1} parent=5 // pred_region
        %s156 = ssub.s32 %s27, 1
        // Predicated region
        $region13: #{tpu_custom_call.1} parent=11 // pred_check
          %p157 = pneg %p74
        $region14: #{tpu_custom_call.1} parent=11 // pred_check_branch
          %159 = sbr.rel (%p157) target = $region16
        $region15: #{tpu_custom_call.1} parent=11 // pred_region
          _
        $region16: #{tpu_custom_call.1} parent=11 // pred_fallthru
          _
        // Predicated region
        $region17: #{tpu_custom_call.1} parent=11 // pred_check
          %p160 = pneg %p95
        $region18: #{tpu_custom_call.1} parent=11 // pred_check_branch
          %162 = sbr.rel (%p160) target = $region20
        $region19: #{tpu_custom_call.1} parent=11 // pred_region
          _
        $region20: #{tpu_custom_call.1} parent=11 // pred_fallthru
          _
        // Predicated region
        $region21: #{tpu_custom_call.1} parent=11 // pred_check
          %p163 = pneg %p116
        $region22: #{tpu_custom_call.1} parent=11 // pred_check_branch
          %165 = sbr.rel (%p163) target = $region24
        $region23: #{tpu_custom_call.1} parent=11 // pred_region
          _
        $region24: #{tpu_custom_call.1} parent=11 // pred_fallthru
          _
      $region12: #{tpu_custom_call.1} parent=5 // pred_fallthru
        _
      %p166 = scmp.lt.s32.totalorder %s27, 2
      // Predicated region
      $region25: #{tpu_custom_call.1} parent=5 // pred_check
        %p167 = pneg %p166
      $region26: #{tpu_custom_call.1} parent=5 // pred_check_branch
        %169 = sbr.rel (%p167) target = $region28
      $region27: #{tpu_custom_call.1} parent=5 // pred_region
        // Predicated region
        $region29: #{tpu_custom_call.1} parent=27 // pred_check
          %p170 = pneg %p47
        $region30: #{tpu_custom_call.1} parent=27 // pred_check_branch
          %172 = sbr.rel (%p170) target = $region32
        $region31: #{tpu_custom_call.1} parent=27 // pred_region
          %p173 = scmp.lt.s32.totalorder %s27, 1
          %s174 = scalar_select %p173, %s27, 1
          %s175 = smul.addr %s174, 8
          %s176 = scalar_lea.vmem %s2, %s175
        $region32: #{tpu_custom_call.1} parent=27 // pred_fallthru
          _
      $region28: #{tpu_custom_call.1} parent=5 // pred_fallthru
        _
      %p177 = scmp.le.s32.totalorder 1, %s27
      %p178 = scmp.lt.s32.totalorder %s27, 3
      %p179 = pnand %p177, %p178
      %p180 = pneg %p179
      // Predicated region
      $region33: #{tpu_custom_call.1} parent=5 // pred_check
        _
      $region34: #{tpu_custom_call.1} parent=5 // pred_check_branch
        %182 = sbr.rel (%p179) target = $region36
      $region35: #{tpu_custom_call.1} parent=5 // pred_region
        %s183 = ssub.s32 %s27, 1
        %p184 = scmp.lt.s32.totalorder %s32, 1
        %s185 = scalar_select %p184, %s32, 1
        %s186 = smul.addr %s185, 8
        %s187 = scalar_lea.vmem %s2, %s186
        %p188 = pneg %p53
        %p189 = pneg %p50
        %p190 = pneg %p74
        %p191 = pneg %p71
        %p192 = pneg %p95
        %p193 = pneg %p92
        %p194 = pneg %p116
        %p195 = pneg %p113
        %p196 = pneg %p142
        %p197 = pneg %p139
        %s198 = sand.u32 %s129, 1
        %s199 = scalar_lea.sflag [#allocation9], %s198
        %s200 = sand.u32 %s129, 1
        %s201 = smul.addr %s200, 8
        %s202 = scalar_lea.vmem [#allocation8], %s201
        %p203 = scmp.lt.s32.totalorder %s32, 1
        %s204 = scalar_select %p203, %s32, 1
        %s205 = smul.addr %s204, 8
        %s206 = scalar_lea.vmem %s2, %s205
        %s207 = smul.u32 %s32, 8
        loop: start=0, step=1, limit=8
        $region37: #{tpu_custom_call.1} parent=35 // loop_pre_header
          _
        $region38: #{tpu_custom_call.1} parent=35 // loop_header
          %s209 = sphi 0, %s213
          %p210 = scmp.ge.s32.totalorder %s209, 8
        $region39: #{tpu_custom_call.1} parent=35 // loop_header_branch
          %212 = sbr.rel (%p210) target = $region43
        $region40: #{tpu_custom_call.1} parent=35 // loop_body
          %s214 = sadd.s32 %s207, %s209
          %s215 = sld [smem:[#allocation6 + %s214]]
          %s216 = sld [smem:[#allocation7 + %s214]]
          %s217 = scalar_lea.vmem %s3, %s215
          %s218 = scalar_lea.vmem [#allocation2], %s209
          %p220 = scmp.lt.u32.totalorder 1, 8
          %p221 = pneg %p220
          // Predicated region
          $region44: #{tpu_custom_call.1} parent=40 // pred_check
            _
          $region45: #{tpu_custom_call.1} parent=40 // pred_check_branch
            %223 = sbr.rel (%p220) target = $region47
          $region46: #{tpu_custom_call.1} parent=40 // pred_region
            %s239 = sand.u32 1, 7
            %p240 = scmp.eq.s32.totalorder %s239, 0
            %p241 = pneg %p240
            // Predicated region
            $region59: #{tpu_custom_call.1} parent=46 // pred_check
              _
            $region60: #{tpu_custom_call.1} parent=46 // pred_check_branch
              %243 = sbr.rel (%p240) target = $region62
            $region61: #{tpu_custom_call.1} parent=46 // pred_region
              %s244 = sand.u32 1, 7
              %s245 = ssub.s32 1, %s244
              %s246 = scalar_lea.vmem %s217, %s245
              %s247 = ssub.s32 1, %s244
              %s248 = scalar_lea.vmem %s218, %s247 [#allocation2]
              %s249 = sshll.u32 1, %s244
              %s250 = ssub.s32 %s249, 1
              loop: start=0, step=1, limit=1
              $region63: #{tpu_custom_call.1} parent=61 // loop_pre_header
                _
              $region64: #{tpu_custom_call.1} parent=61 // loop_header
                %s252 = sphi 0, %s256
                %p253 = scmp.ge.s32.totalorder %s252, 1
                %s257 = sphi %s246, %s246
                %s258 = sphi %s248, %s248
              $region65: #{tpu_custom_call.1} parent=61 // loop_header_branch
                %255 = sbr.rel (%p253) target = $region69
              $region66: #{tpu_custom_call.1} parent=61 // loop_body
                %v259 = vld [vmem:[%s257] sm:%s250]
                %260 = vst [vmem:[%s258] sm:%s250] %v259
              $region67: #{tpu_custom_call.1} parent=61 // loop_footer
                %s256 = sadd.s32 1, %s252
              $region68: #{tpu_custom_call.1} parent=61 // loop_footer_branch
                %251 = sbr.rel target = $region64
              $region69: #{tpu_custom_call.1} parent=61 // loop_exit
                _
            $region62: #{tpu_custom_call.1} parent=46 // pred_fallthru
              _
          $region47: #{tpu_custom_call.1} parent=40 // pred_fallthru
            _
          // Predicated region
          $region48: #{tpu_custom_call.1} parent=40 // pred_check
            %p224 = pneg %p220
          $region49: #{tpu_custom_call.1} parent=40 // pred_check_branch
            %226 = sbr.rel (%p224) target = $region51
          $region50: #{tpu_custom_call.1} parent=40 // pred_region
            %s227 = sshll.u32 1, 1
            %s228 = ssub.s32 %s227, 1
            loop: start=0, step=1, limit=1
            $region52: #{tpu_custom_call.1} parent=50 // loop_pre_header
              _
            $region53: #{tpu_custom_call.1} parent=50 // loop_header
              %s230 = sphi 0, %s234
              %p231 = scmp.ge.s32.totalorder %s230, 1
              %s235 = sphi %s217, %s217
              %s236 = sphi %s218, %s218
            $region54: #{tpu_custom_call.1} parent=50 // loop_header_branch
              %233 = sbr.rel (%p231) target = $region58
            $region55: #{tpu_custom_call.1} parent=50 // loop_body
              %v237 = vld [vmem:[%s235] sm:%s228]
              %238 = vst [vmem:[%s236] sm:%s228] %v237
            $region56: #{tpu_custom_call.1} parent=50 // loop_footer
              %s234 = sadd.s32 1, %s230
            $region57: #{tpu_custom_call.1} parent=50 // loop_footer_branch
              %229 = sbr.rel target = $region53
            $region58: #{tpu_custom_call.1} parent=50 // loop_exit
              _
          $region51: #{tpu_custom_call.1} parent=40 // pred_fallthru
            _
          // Predicated region
          $region70: #{tpu_custom_call.1} parent=40 // pred_check
            _
          $region71: #{tpu_custom_call.1} parent=40 // pred_check_branch
            %263 = sbr.rel (0) target = $region73
          $region72: #{tpu_custom_call.1} parent=40 // pred_region
            %264 = vsyncadd [#allocation4], 16
          $region73: #{tpu_custom_call.1} parent=40 // pred_fallthru
            _
          %s265 = scalar_lea.vmem %s4, %s216
          %s266 = scalar_lea.vmem [#allocation3], %s209
          %s267 = scalar_lea.sflag [#allocation4], 1
          %p269 = scmp.lt.u32.totalorder 1, 8
          %p270 = pneg %p269
          // Predicated region
          $region74: #{tpu_custom_call.1} parent=40 // pred_check
            _
          $region75: #{tpu_custom_call.1} parent=40 // pred_check_branch
            %272 = sbr.rel (%p269) target = $region77
          $region76: #{tpu_custom_call.1} parent=40 // pred_region
            %s288 = sand.u32 1, 7
            %p289 = scmp.eq.s32.totalorder %s288, 0
            %p290 = pneg %p289
            // Predicated region
            $region89: #{tpu_custom_call.1} parent=76 // pred_check
              _
            $region90: #{tpu_custom_call.1} parent=76 // pred_check_branch
              %292 = sbr.rel (%p289) target = $region92
            $region91: #{tpu_custom_call.1} parent=76 // pred_region
              %s293 = sand.u32 1, 7
              %s294 = ssub.s32 1, %s293
              %s295 = scalar_lea.vmem %s265, %s294
              %s296 = ssub.s32 1, %s293
              %s297 = scalar_lea.vmem %s266, %s296 [#allocation3]
              %s298 = sshll.u32 1, %s293
              %s299 = ssub.s32 %s298, 1
              loop: start=0, step=1, limit=1
              $region93: #{tpu_custom_call.1} parent=91 // loop_pre_header
                _
              $region94: #{tpu_custom_call.1} parent=91 // loop_header
                %s301 = sphi 0, %s305
                %p302 = scmp.ge.s32.totalorder %s301, 1
                %s306 = sphi %s295, %s295
                %s307 = sphi %s297, %s297
              $region95: #{tpu_custom_call.1} parent=91 // loop_header_branch
                %304 = sbr.rel (%p302) target = $region99
              $region96: #{tpu_custom_call.1} parent=91 // loop_body
                %v308 = vld [vmem:[%s306] sm:%s299]
                %309 = vst [vmem:[%s307] sm:%s299] %v308
              $region97: #{tpu_custom_call.1} parent=91 // loop_footer
                %s305 = sadd.s32 1, %s301
              $region98: #{tpu_custom_call.1} parent=91 // loop_footer_branch
                %300 = sbr.rel target = $region94
              $region99: #{tpu_custom_call.1} parent=91 // loop_exit
                _
            $region92: #{tpu_custom_call.1} parent=76 // pred_fallthru
              _
          $region77: #{tpu_custom_call.1} parent=40 // pred_fallthru
            _
          // Predicated region
          $region78: #{tpu_custom_call.1} parent=40 // pred_check
            %p273 = pneg %p269
          $region79: #{tpu_custom_call.1} parent=40 // pred_check_branch
            %275 = sbr.rel (%p273) target = $region81
          $region80: #{tpu_custom_call.1} parent=40 // pred_region
            %s276 = sshll.u32 1, 1
            %s277 = ssub.s32 %s276, 1
            loop: start=0, step=1, limit=1
            $region82: #{tpu_custom_call.1} parent=80 // loop_pre_header
              _
            $region83: #{tpu_custom_call.1} parent=80 // loop_header
              %s279 = sphi 0, %s283
              %p280 = scmp.ge.s32.totalorder %s279, 1
              %s284 = sphi %s265, %s265
              %s285 = sphi %s266, %s266
            $region84: #{tpu_custom_call.1} parent=80 // loop_header_branch
              %282 = sbr.rel (%p280) target = $region88
            $region85: #{tpu_custom_call.1} parent=80 // loop_body
              %v286 = vld [vmem:[%s284] sm:%s277]
              %287 = vst [vmem:[%s285] sm:%s277] %v286
            $region86: #{tpu_custom_call.1} parent=80 // loop_footer
              %s283 = sadd.s32 1, %s279
            $region87: #{tpu_custom_call.1} parent=80 // loop_footer_branch
              %278 = sbr.rel target = $region83
            $region88: #{tpu_custom_call.1} parent=80 // loop_exit
              _
          $region81: #{tpu_custom_call.1} parent=40 // pred_fallthru
            _
          // Predicated region
          $region100: #{tpu_custom_call.1} parent=40 // pred_check
            _
          $region101: #{tpu_custom_call.1} parent=40 // pred_check_branch
            %312 = sbr.rel (0) target = $region103
          $region102: #{tpu_custom_call.1} parent=40 // pred_region
            %313 = vsyncadd %s267, 16
          $region103: #{tpu_custom_call.1} parent=40 // pred_fallthru
            _
        $region41: #{tpu_custom_call.1} parent=35 // loop_footer
          %s213 = sadd.s32 1, %s209
        $region42: #{tpu_custom_call.1} parent=35 // loop_footer_branch
          %208 = sbr.rel target = $region38
        $region43: #{tpu_custom_call.1} parent=35 // loop_exit
          _
        %v314 = vld [vmem:[%s206] sm:$0xff]
        %v315 = vld [vmem:[%s5] sm:$0x1]
        %vm316 = vcmp.eq.s32.totalorder %v314, 0
        %v317 = vsel %vm316, 1.0, 0.0
        %319 = vset.pattern.permute.xlu0 0
        %320 = vperm.xlu0 %319, %v317
        %v321 = vpop.permute.xlu0 %320
        %v323 = vlaneseq
        %v324 = vshrl.u32 %v323, 7
        %v325 = vsub.s32 0, %v324
        %v326 = vrot.slane %v315, %v325
        %v327 = vmul.f32 %v321, %v326
        %v328 = vadd.f32 %v327, 0.0
        %v329 = vld [vmem:[%s5 + $0x1] sm:$0x1]
        %vm330 = vcmp.eq.s32.totalorder %v314, 1
        %v331 = vsel %vm330, 1.0, 0.0
        %333 = vset.pattern.permute.xlu0 0
        %334 = vperm.xlu0 %333, %v331
        %v335 = vpop.permute.xlu0 %334
        %v337 = vlaneseq
        %v338 = vshrl.u32 %v337, 7
        %v339 = vsub.s32 0, %v338
        %v340 = vrot.slane %v329, %v339
        %v341 = vmul.f32 %v335, %v340
        %v342 = vadd.f32 %v328, %v341
        loop: start=0, step=1, limit=8
        $region104: #{tpu_custom_call.1} parent=35 // loop_pre_header
          _
        $region105: #{tpu_custom_call.1} parent=35 // loop_header
          %s344 = sphi 0, %s348
          %p345 = scmp.ge.s32.totalorder %s344, 8
        $region106: #{tpu_custom_call.1} parent=35 // loop_header_branch
          %347 = sbr.rel (%p345) target = $region110
        $region107: #{tpu_custom_call.1} parent=35 // loop_body
          %s349 = smul.u32 1, 1
          %s350 = sshll.u32 %s349, 4
          %351 = dma.done [#allocation4], %s350
          %s352 = scalar_lea.sflag [#allocation4], 1
          %s353 = sshll.u32 %s349, 4
          %354 = dma.done %s352, %s353
        $region108: #{tpu_custom_call.1} parent=35 // loop_footer
          %s348 = sadd.s32 1, %s344
        $region109: #{tpu_custom_call.1} parent=35 // loop_footer_branch
          %343 = sbr.rel target = $region105
        $region110: #{tpu_custom_call.1} parent=35 // loop_exit
          _
        %v355 = vld [vmem:[#allocation2] sm:$0xff]
        %v356 = vld [vmem:[#allocation3] sm:$0xff]
        %v357 = vadd.f32 %v355, %v356
        %v358 = vadd.f32 %v357, %v342
        %vm359 = vcmask 261120
        %v360 = vsel %vm359, %v358, 0.0
        %361 = vadd.xlane.f32.xlu0 %v360
        %v362 = vpop.xlane.xlu0 %361
        %v363 = vrcp.pop 32.0
        %v364 = vmul.f32 %v362, %v363
        %v365 = vsub.f32 %v358, %v364
        %v366 = vmul.f32 %v365, %v365
        %v367 = vsel %vm359, %v366, 0.0
        %368 = vadd.xlane.f32.xlu0 %v367
        %v369 = vpop.xlane.xlu0 %368
        %v370 = vmul.f32 %v369, %v363
        %v371 = vadd.f32 %v370, 1e-12
        %v372 = vrsqrt.pop %v371
        %v373 = vld [vmem:[%s6] sm:$0x1]
        %v375 = vlaneseq
        %v376 = vshrl.u32 %v375, 7
        %v377 = vsub.s32 0, %v376
        %v378 = vrot.slane %v373, %v377
        %v380 = vmul.f32 %v372, %v378
        %v381 = vmul.f32 %v365, %v380
        %v382 = vld [vmem:[%s7] sm:$0x1]
        %v384 = vlaneseq
        %v385 = vshrl.u32 %v384, 7
        %v386 = vsub.s32 0, %v385
        %v387 = vrot.slane %v382, %v386
        %v389 = vadd.f32 %v381, %v387
        %390 = vst.msk [vmem:[%s202] sm:$0xff] %vm359, %v389
        %s391 = sand.u32 %s129, 1
        %s392 = scalar_lea.sflag [#allocation9], %s391
        %s393 = sand.u32 %s129, 1
        %s394 = smul.addr %s393, 8
        %s395 = scalar_lea.vmem [#allocation8], %s394
        // Predicated region
        $region111: #{tpu_custom_call.1} parent=35 // pred_check
          %p396 = pneg %p139
        $region112: #{tpu_custom_call.1} parent=35 // pred_check_branch
          %398 = sbr.rel (%p396) target = $region114
        $region113: #{tpu_custom_call.1} parent=35 // pred_region
          %s400 = ssub.s32 128, 128
          %401 = vsyncadd %s392, %s400
          %s402 = smul.addr %s32, 128
          %s403 = scalar_lea.hbm %s8, %s402
          %s405 = sshll.u32 %s395, 4
          %s406 = int_to_ptr.vmem [resolvable:$true] %s405
          %408 = dma.vmem_to_hbm [thread:$0]  %s406, 128, %s403, %s392
        $region114: #{tpu_custom_call.1} parent=35 // pred_fallthru
          _
      $region36: #{tpu_custom_call.1} parent=5 // pred_fallthru
        _
      %p409 = scmp.le.s32.totalorder 2, %s27
      // Predicated region
      $region115: #{tpu_custom_call.1} parent=5 // pred_check
        %p410 = pneg %p409
      $region116: #{tpu_custom_call.1} parent=5 // pred_check_branch
        %412 = sbr.rel (%p410) target = $region118
      $region117: #{tpu_custom_call.1} parent=5 // pred_region
        %s413 = ssub.s32 %s27, 2
        // Predicated region
        $region119: #{tpu_custom_call.1} parent=117 // pred_check
          %p414 = pneg %p145
        $region120: #{tpu_custom_call.1} parent=117 // pred_check_branch
          %416 = sbr.rel (%p414) target = $region122
        $region121: #{tpu_custom_call.1} parent=117 // pred_region
          %s417 = sand.u32 %s130, 1
          %s418 = scalar_lea.sflag [#allocation9], %s417
          %s419 = sand.u32 %s130, 1
          %s420 = smul.addr %s419, 8
          %s421 = scalar_lea.vmem [#allocation8], %s420
          %422 = dma.done %s418, 128
        $region122: #{tpu_custom_call.1} parent=117 // pred_fallthru
          _
      $region118: #{tpu_custom_call.1} parent=5 // pred_fallthru
        _
    $region6: #{tpu_custom_call.1} parent=1 // loop_footer
      %s31 = sadd.s32 1, %s27
    $region7: #{tpu_custom_call.1} parent=1 // loop_footer_branch
      %26 = sbr.rel target = $region3
    $region8: #{tpu_custom_call.1} parent=1 // loop_exit
      _
    %423 = vsyncpa [#allocation9], 1
    %s424 = scalar_lea.sflag [#allocation9], 1
    %425 = vsyncpa %s424, 1
  %426 = vsyncmov [#allocation4]
  %s427 = vpop.sfrf %426
  %p428 = scmp.eq.s32.totalorder %s427, 0
  %p429 = pneg %p428
  %431 = shalt.err (%p429)
  %s432 = scalar_lea.sflag [#allocation4], 1
  %433 = vsyncmov %s432
  %s434 = vpop.sfrf %433
  %p435 = scmp.eq.s32.totalorder %s434, 0
  %p436 = pneg %p435
  %438 = shalt.err (%p436)

</llo_original>
